<compile_context>
chip_gen: v5e
topology: v5e:2x2
jax: 0.10.0
libtpu: 0.0.40
codegen_flags: <defaults>
</compile_context>

<pallas_src>
import functools

import jax
import jax.numpy as jnp
from jax.experimental import pallas as pl
from jax.experimental.pallas import tpu as pltpu

_MIB = 1024 * 1024
_VMEM_LIMIT_BYTES = 48 * _MIB          # fixed, modest; safe on v7x 64 MiB/TC
_DEFAULT_BLOCK_BYTES = 4 * _MIB        # HBM-roofline sweet spot on v5e/v6e/v7x


def _round_up(x: int, m: int) -> int:
    return ((x + m - 1) // m) * m


def _max_rows_for_vmem(kern_hidden: int, itemsize: int) -> int:
    """Safety cap: rows whose double-buffered in/out blocks + temps fit VMEM."""
    # 2x in + 2x out blocks in native dtype, plus working copies:
    # ~2 f32 temps for f32 inputs; 1 f32 + 1 native temp for narrow inputs
    # (the normalize pass stays in the input dtype there).
    temps = 2 * 4 if itemsize >= 4 else (4 + itemsize)
    per_row = kern_hidden * (4 * itemsize + temps)
    budget = int(_VMEM_LIMIT_BYTES * 0.85)       # headroom for compiler scratch
    return max(1, budget // per_row)


def _second_pass_dtype(x):
    # f32 inputs: stay in f32. Sub-32-bit (bf16/fp8/int8): normalize/scale in
    # the input dtype (bf16 VPU on v6e/v7x; correct-but-widened on v5e).
    return x.dtype if jnp.dtype(x.dtype).itemsize < 4 else jnp.float32


def _rmsnorm_kernel(x_ref, w_ref, o_ref, *, eps: float, inv_hidden: float):
    """Plain path: reduce over the full lane (hidden) axis."""
    x = x_ref[...]                                    # (row_tile, hidden)
    xf = x.astype(jnp.float32)
    # sum * (1/hidden): cheap VPU mul by a compile-time constant; rsqrt -> EUP.
    ms = jnp.sum(xf * xf, axis=-1, keepdims=True) * inv_hidden
    inv = jax.lax.rsqrt(ms + eps)                     # (row_tile, 1), f32
    cdt = _second_pass_dtype(x)
    y = x.astype(cdt) * inv.astype(cdt)
    o_ref[...] = (w_ref[...].astype(cdt) * y).astype(o_ref.dtype)


def _rmsnorm_folded_kernel(x_ref, w_ref, seg_ref, o_ref, *,
                           eps: float, inv_hidden: float):
    """Lane-dense path: g = 128 // hidden rows folded into one 128-lane row.

    The per-segment sum-of-squares is a tiny block-diagonal matmul on the
    otherwise-idle MXU; its result is already broadcast back to every lane of
    its segment, so no cross-lane reshapes/relayouts are needed.
    """
    x = x_ref[...]                                    # (row_tile, 128)
    xf = x.astype(jnp.float32)
    ms = jnp.dot(xf * xf, seg_ref[...],
                 preferred_element_type=jnp.float32) * inv_hidden
    inv = jax.lax.rsqrt(ms + eps)                     # (row_tile, 128), f32
    cdt = _second_pass_dtype(x)
    y = x.astype(cdt) * inv.astype(cdt)
    o_ref[...] = (w_ref[...].astype(cdt) * y).astype(o_ref.dtype)


def rmsnorm(x: jax.Array, weight: jax.Array, eps: float = 1e-5,
            row_tile: int | None = None,
            target_block_bytes: int = _DEFAULT_BLOCK_BYTES) -> jax.Array:
    """RMSNorm over the last axis of x, scaled by `weight` (shape (hidden,))."""
    orig_shape = x.shape
    hidden = orig_shape[-1]
    assert weight.shape == (hidden,)

    x2d = x.reshape(-1, hidden)
    rows = x2d.shape[0]

    # Lane-dense fold for small hidden (unmasked full-width stores).
    fold = 1
    if hidden < 128 and 128 % hidden == 0:
        g = 128 // hidden
        if rows % g == 0:
            fold = g
    if fold > 1:
        kern_hidden = fold * hidden                   # == 128
        x2d = x2d.reshape(rows // fold, kern_hidden)
        rows = rows // fold
        w2d = jnp.tile(weight, fold).reshape(1, kern_hidden)
        seg_idx = jnp.arange(kern_hidden) // hidden
        seg = (seg_idx[:, None] == seg_idx[None, :]).astype(jnp.float32)
    else:
        kern_hidden = hidden
        w2d = weight.reshape(1, kern_hidden)
        seg = None

    itemsize = jnp.dtype(x.dtype).itemsize
    # Sub-32-bit dtypes pack along sublanes: 8 rows/vreg f32, 16 bf16, 32 int8.
    packing = max(8, 32 // itemsize)

    if row_tile is None:
        # Byte-targeted block size (HBM-roofline op; big-VMEM fills buy nothing).
        row_tile = max(1, target_block_bytes // (kern_hidden * itemsize))
        # Keep at least ~4 grid steps so the DMA pipeline has work to overlap
        # (and both v7x TensorCores stay busy under "parallel").
        row_tile = min(row_tile, _round_up(pl.cdiv(rows, 4), packing))
        # Safety net against exceeding the fixed scoped-VMEM request.
        row_tile = min(row_tile, _max_rows_for_vmem(kern_hidden, itemsize))

    if row_tile >= rows:
        row_tile = rows                # single block; dim == array dim is legal
    else:
        row_tile = max(packing, (row_tile // packing) * packing)

    # Ragged last block handled by Pallas masking: rows are independent, so
    # garbage in OOB input rows only affects OOB output rows (stores masked).
    grid = (pl.cdiv(rows, row_tile),)

    kernel = _rmsnorm_folded_kernel if fold > 1 else _rmsnorm_kernel
    kernel = functools.partial(kernel, eps=float(eps), inv_hidden=1.0 / hidden)

    in_specs = [
        pl.BlockSpec((row_tile, kern_hidden), lambda i: (i, 0)),
        pl.BlockSpec((1, kern_hidden), lambda i: (0, 0)),
    ]
    operands = [x2d, w2d]
    if fold > 1:
        in_specs.append(pl.BlockSpec((kern_hidden, kern_hidden),
                                     lambda i: (0, 0)))
        operands.append(seg)

    out = pl.pallas_call(
        kernel,
        out_shape=jax.ShapeDtypeStruct((rows, kern_hidden), x.dtype),
        grid_spec=pltpu.PrefetchScalarGridSpec(
            num_scalar_prefetch=0,
            grid=grid,
            in_specs=in_specs,
            out_specs=pl.BlockSpec((row_tile, kern_hidden), lambda i: (i, 0)),
        ),
        compiler_params=pltpu.CompilerParams(
            dimension_semantics=("parallel",),
            vmem_limit_bytes=_VMEM_LIMIT_BYTES),
    )(*operands)

    # Folded view has identical row-major element order, so a plain reshape
    # restores the original layout.
    return out.reshape(orig_shape)


def _reference(x, weight, eps):
    mean_square = jnp.mean(x * x, axis=-1, keepdims=True)
    return weight * (x * jax.lax.rsqrt(mean_square + eps))


if __name__ == "__main__":
    eps = 1e-5
    key = jax.random.PRNGKey(0)

    # RMSNorm(dim=hidden) on a (batch, seq, hidden) input; hidden=32 exercises
    # the lane-dense folded path (32 divides 128).
    batch, seq, hidden = 2, 8, 32
    x = jax.random.normal(key, (batch, seq, hidden), dtype=jnp.float32)
    weight = jnp.ones((hidden,), dtype=jnp.float32)   # nn.Parameter(torch.ones(dim))
    out = jax.block_until_ready(rmsnorm(x, weight, eps=eps))
    ref = _reference(x, weight, eps)
    assert jnp.allclose(out, ref, atol=1e-5, rtol=1e-5), "mismatch vs reference"

    # Plain path with a ragged last row-block (15 rows, row_tile=8) and a
    # non-trivial weight.
    k1, k2 = jax.random.split(key)
    x2 = jax.random.normal(k1, (3, 5, 128), dtype=jnp.float32)
    w2 = 1.0 + 0.1 * jax.random.normal(k2, (128,), dtype=jnp.float32)
    out2 = jax.block_until_ready(rmsnorm(x2, w2, eps=eps, row_tile=8))
    ref2 = _reference(x2, w2, eps)
    assert jnp.allclose(out2, ref2, atol=1e-5, rtol=1e-5), "ragged mismatch"

    print("KERNEL_OK")
</pallas_src>

<mosaic_0001>
module attributes {stable_mosaic.version = 11 : i64} {
  func.func @_rmsnorm_folded_kernel(%arg0: i32, %arg1: memref<4x128xf32, #tpu.memory_space<vmem>>, %arg2: memref<1x128xf32, #tpu.memory_space<vmem>>, %arg3: memref<128x128xf32, #tpu.memory_space<vmem>>, %arg4: memref<4x128xf32, #tpu.memory_space<vmem>>) attributes {dimension_semantics = [#tpu.dimension_semantics<parallel>], iteration_bounds = array<i64: 1>, scalar_prefetch = 0 : i64, scratch_operands = 0 : i64, tpu.core_type = #tpu.core_type<tc>, window_params = [{transform_indices = @transform_0, window_bounds = array<i64: 4, 128>}, {pipeline_mode = #tpu.pipeline_mode<synchronous>, transform_indices = @transform_1, window_bounds = array<i64: 1, 128>}, {pipeline_mode = #tpu.pipeline_mode<synchronous>, transform_indices = @transform_2, window_bounds = array<i64: 128, 128>}, {transform_indices = @transform_3, window_bounds = array<i64: 4, 128>}]} {
    %c0 = arith.constant 0 : index
    %c0_0 = arith.constant 0 : index
    %0 = vector.load %arg1[%c0, %c0_0] : memref<4x128xf32, #tpu.memory_space<vmem>>, vector<4x128xf32>
    %1 = arith.mulf %0, %0 : vector<4x128xf32>
    %c0_1 = arith.constant 0 : index
    %c0_2 = arith.constant 0 : index
    %2 = vector.load %arg3[%c0_1, %c0_2] : memref<128x128xf32, #tpu.memory_space<vmem>>, vector<128x128xf32>
    %cst = arith.constant dense<0.000000e+00> : vector<4x128xf32>
    %3 = tpu.matmul %1, %2, %cst {dimension_numbers = #tpu.dot_dimension_numbers<[1], [0], [0], [1], [0, 0, 1, 1], [], []>} : vector<4x128xf32>, vector<128x128xf32>, vector<4x128xf32> -> vector<4x128xf32>
    %cst_3 = arith.constant 3.125000e-02 : f32
    %4 = vector.broadcast %cst_3 : f32 to vector<4x128xf32>
    %5 = arith.mulf %3, %4 : vector<4x128xf32>
    %cst_4 = arith.constant 9.99999974E-6 : f32
    %6 = vector.broadcast %cst_4 : f32 to vector<4x128xf32>
    %7 = arith.addf %5, %6 : vector<4x128xf32>
    %8 = math.rsqrt %7 : vector<4x128xf32>
    %9 = arith.mulf %0, %8 : vector<4x128xf32>
    %c0_5 = arith.constant 0 : index
    %c0_6 = arith.constant 0 : index
    %10 = vector.load %arg2[%c0_5, %c0_6] : memref<1x128xf32, #tpu.memory_space<vmem>>, vector<1x128xf32>
    %11 = vector.broadcast %10 : vector<1x128xf32> to vector<4x128xf32>
    %12 = arith.mulf %11, %9 : vector<4x128xf32>
    %c0_7 = arith.constant 0 : index
    %c0_8 = arith.constant 0 : index
    %13 = vector.load %arg4[%c0_7, %c0_8] : memref<4x128xf32, #tpu.memory_space<vmem>>, vector<4x128xf32>
    tpu.vector_store %arg4[%c0_7, %c0_8], %12 {strides = array<i32>} : memref<4x128xf32, #tpu.memory_space<vmem>>, vector<4x128xf32>,
    return
  }
  func.func @transform_0(%arg0: i32) -> (i32, i32) {
    %c0_i32 = arith.constant 0 : i32
    %c0_i32_0 = arith.constant 0 : i32
    return %arg0, %c0_i32 : i32, i32
  }
  func.func @transform_1(%arg0: i32) -> (i32, i32) {
    %c0_i32 = arith.constant 0 : i32
    %c0_i32_0 = arith.constant 0 : i32
    %c0_i32_1 = arith.constant 0 : i32
    return %c0_i32, %c0_i32_0 : i32, i32
  }
  func.func @transform_2(%arg0: i32) -> (i32, i32) {
    %c0_i32 = arith.constant 0 : i32
    %c0_i32_0 = arith.constant 0 : i32
    %c0_i32_1 = arith.constant 0 : i32
    return %c0_i32, %c0_i32_0 : i32, i32
  }
  func.func @transform_3(%arg0: i32) -> (i32, i32) {
    %c0_i32 = arith.constant 0 : i32
    %c0_i32_0 = arith.constant 0 : i32
    return %arg0, %c0_i32 : i32, i32
  }
}

</mosaic_0001>

<llo_original>
// kernel: tpu_custom_call.1
$region0: #{tpu_custom_call.1}
  #allocation0 [shape = 'u32[]', space=smem, size = 0x4, offset = 0x4, fixed_abs, tag = 'smem constant byte address 0x4 - core index']
  #allocation1 [shape = 'u32[72,128]{1,0:T(1,128)}', space=vmem, size = 0x9000, scoped, tag = 'internal scratch']
  %s0 = inlined_call_operand.hbm [shape: f32[4,128], index: 0, kind: input, shape index: {}]
  %s1 = inlined_call_operand.hbm [shape: f32[1,128], index: 1, kind: input, shape index: {}]
  %s2 = inlined_call_operand.hbm [shape: f32[128,128], index: 2, kind: input, shape index: {}]
  %s3 = inlined_call_operand.hbm [shape: f32[4,128], index: 3, kind: output, shape index: {}]
  %s4 = sld [smem:[#allocation0]]
  $region34: #{tpu_custom_call.1} parent=0
    _
  %s6 = ssub.s32 1, %s4
  %s7 = scalar_select 0, %s6, %s4
  $region1: #{tpu_custom_call.1} parent=0
    #allocation2 [shape = 'u8[2048]{0}', space=vmem, size = 0x800, scoped, tag = 'input window, operand 0, single buffered']
    #allocation3 [shape = 's32[1]{0}', space=sflag, size = 0x4, scoped, tag = 'scoped memory for tpu_custom_call.1']
    #allocation4 [shape = 's32[1]{0}', space=sflag, size = 0x4, scoped, tag = 'scoped memory for tpu_custom_call.1']
    #allocation5 [shape = 'u8[512]{0}', space=vmem, size = 0x400, scoped, tag = 'input window, operand 1, single buffered']
    #allocation6 [shape = 's32[1]{0}', space=sflag, size = 0x4, scoped, tag = 'scoped memory for tpu_custom_call.1']
    #allocation7 [shape = 'u8[65536]{0}', space=vmem, size = 0x10000, scoped, tag = 'input window, operand 2, single buffered']
    #allocation8 [shape = 'u8[2048]{0}', space=vmem, size = 0x800, scoped, tag = 'output window, operand 0, single buffered']
    %8 = vsyncpa [#allocation3], 0
    %9 = vsyncpa [#allocation6], 0
    %10 = vsyncpa [#allocation4], 0
    // Predicated region
    $region2: #{tpu_custom_call.1} parent=1 // pred_check
      _
    $region3: #{tpu_custom_call.1} parent=1 // pred_check_branch
      %12 = sbr.rel (0) target = $region5
    $region4: #{tpu_custom_call.1} parent=1 // pred_region
      %14 = vsyncadd [#allocation3], 0
      %s16 = sshll.u32 %s0, 4
      %s17 = int_to_ptr.hbm [resolvable:$true] %s16
      %s18 = sshll.u32 [#allocation2], 4
      %s19 = int_to_ptr.vmem [resolvable:$true] %s18
      %21 = dma.hbm_to_vmem [thread:$0]  %s17, 64, %s19, [#allocation3]
    $region5: #{tpu_custom_call.1} parent=1 // pred_fallthru
      _
    // Predicated region
    $region6: #{tpu_custom_call.1} parent=1 // pred_check
      _
    $region7: #{tpu_custom_call.1} parent=1 // pred_check_branch
      %23 = sbr.rel (0) target = $region9
    $region8: #{tpu_custom_call.1} parent=1 // pred_region
      %25 = vsyncadd [#allocation6], 0
      %s27 = sshll.u32 %s1, 4
      %s28 = int_to_ptr.hbm [resolvable:$true] %s27
      %s29 = sshll.u32 [#allocation5], 4
      %s30 = int_to_ptr.vmem [resolvable:$true] %s29
      %32 = dma.hbm_to_vmem [thread:$0]  %s28, 16, %s30, [#allocation6]
    $region9: #{tpu_custom_call.1} parent=1 // pred_fallthru
      _
    // Predicated region
    $region10: #{tpu_custom_call.1} parent=1 // pred_check
      _
    $region11: #{tpu_custom_call.1} parent=1 // pred_check_branch
      %34 = sbr.rel (0) target = $region13
    $region12: #{tpu_custom_call.1} parent=1 // pred_region
      %36 = vsyncadd [#allocation6], 0
      %s37 = sshll.u32 %s2, 4
      %s38 = int_to_ptr.hbm [resolvable:$true] %s37
      %s39 = sshll.u32 [#allocation7], 4
      %s40 = int_to_ptr.vmem [resolvable:$true] %s39
      %45 = dma.hbm_to_vmem [thread:$0]  %s38, 2048, %s40, [#allocation6], 128, 128, 8
    $region13: #{tpu_custom_call.1} parent=1 // pred_fallthru
      _
    // Predicated region
    $region14: #{tpu_custom_call.1} parent=1 // pred_check
      _
    $region15: #{tpu_custom_call.1} parent=1 // pred_check_branch
      %47 = sbr.rel (0) target = $region17
    $region16: #{tpu_custom_call.1} parent=1 // pred_region
      %49 = dma.done [#allocation3], 64
    $region17: #{tpu_custom_call.1} parent=1 // pred_fallthru
      _
    // Predicated region
    $region18: #{tpu_custom_call.1} parent=1 // pred_check
      _
    $region19: #{tpu_custom_call.1} parent=1 // pred_check_branch
      %51 = sbr.rel (0) target = $region21
    $region20: #{tpu_custom_call.1} parent=1 // pred_region
      %53 = dma.done [#allocation6], 16
    $region21: #{tpu_custom_call.1} parent=1 // pred_fallthru
      _
    // Predicated region
    $region22: #{tpu_custom_call.1} parent=1 // pred_check
      _
    $region23: #{tpu_custom_call.1} parent=1 // pred_check_branch
      %55 = sbr.rel (0) target = $region25
    $region24: #{tpu_custom_call.1} parent=1 // pred_region
      %57 = dma.done [#allocation6], 2048
    $region25: #{tpu_custom_call.1} parent=1 // pred_fallthru
      _
    %v58 = vld [vmem:[#allocation2] sm:$0xf]
    %v59 = vmul.f32 %v58, %v58
    %v60 = vld [vmem:[#allocation7] sm:$0xff]
    %v61 = vld [vmem:[#allocation7 + $0x8] sm:$0xff]
    %v62 = vld [vmem:[#allocation7 + $0x10] sm:$0xff]
    %v63 = vld [vmem:[#allocation7 + $0x18] sm:$0xff]
    %v64 = vld [vmem:[#allocation7 + $0x20] sm:$0xff]
    %v65 = vld [vmem:[#allocation7 + $0x28] sm:$0xff]
    %v66 = vld [vmem:[#allocation7 + $0x30] sm:$0xff]
    %v67 = vld [vmem:[#allocation7 + $0x38] sm:$0xff]
    %v68 = vld [vmem:[#allocation7 + $0x40] sm:$0xff]
    %v69 = vld [vmem:[#allocation7 + $0x48] sm:$0xff]
    %v70 = vld [vmem:[#allocation7 + $0x50] sm:$0xff]
    %v71 = vld [vmem:[#allocation7 + $0x58] sm:$0xff]
    %v72 = vld [vmem:[#allocation7 + $0x60] sm:$0xff]
    %v73 = vld [vmem:[#allocation7 + $0x68] sm:$0xff]
    %v74 = vld [vmem:[#allocation7 + $0x70] sm:$0xff]
    %v75 = vld [vmem:[#allocation7 + $0x78] sm:$0xff]
    %76 = vmatpush.msra.mxu0 %v75
    %77 = vmatpush.msra.mxu0 %v74
    %78 = vmatpush.msra.mxu0 %v73
    %79 = vmatpush.msra.mxu0 %v72
    %80 = vmatpush.msra.mxu0 %v71
    %81 = vmatpush.msra.mxu0 %v70
    %82 = vmatpush.msra.mxu0 %v69
    %83 = vmatpush.msra.mxu0 %v68
    %84 = vmatpush.msra.mxu0 %v67
    %85 = vmatpush.msra.mxu0 %v66
    %86 = vmatpush.msra.mxu0 %v65
    %87 = vmatpush.msra.mxu0 %v64
    %88 = vmatpush.msra.mxu0 %v63
    %89 = vmatpush.msra.mxu0 %v62
    %90 = vmatpush.msra.mxu0 %v61
    %91 = vmatpush.msra.mxu0 %v60
    %92 = vmatmul.f32.gmra.mxu0 %v59
    %v93 = vpop.f32.mrf.mxu0
    %v94 = vadd.f32 0.0, %v93
    %95 = vdwg.mxu0
    %v96 = vmul.f32 %v94, 0.03125
    %v97 = vadd.f32 %v96, 1e-05
    %v98 = vrsqrt.pop %v97
    %v99 = vmul.f32 %v98, %v97
    %v100 = vmul.f32 %v99, %v98
    %v101 = vmul.f32 0.5, %v100
    %v102 = vsub.f32 1.5, %v101
    %v103 = vmul.f32 %v98, %v102
    %vm104 = vweird.f32 %v97
    %vm105 = vweird.f32 %v98
    %vm106 = vmor %vm104, %vm105
    %v107 = vsel %vm106, %v98, %v103
    %v108 = vmul.f32 %v58, %v107
    %v109 = vld [vmem:[#allocation5] sm:$0x1]
    %v111 = vperm.slane %v109, 0
    %v113 = vmul.f32 %v111, %v108
    %114 = vst [vmem:[#allocation8] sm:$0xf] %v113
    // Predicated region
    $region26: #{tpu_custom_call.1} parent=1 // pred_check
      _
    $region27: #{tpu_custom_call.1} parent=1 // pred_check_branch
      %116 = sbr.rel (0) target = $region29
    $region28: #{tpu_custom_call.1} parent=1 // pred_region
      %118 = vsyncadd [#allocation4], 0
      %s120 = sshll.u32 [#allocation8], 4
      %s121 = int_to_ptr.vmem [resolvable:$true] %s120
      %s122 = sshll.u32 %s3, 4
      %s123 = int_to_ptr.hbm [resolvable:$true] %s122
      %125 = dma.vmem_to_hbm [thread:$0]  %s121, 64, %s123, [#allocation4]
    $region29: #{tpu_custom_call.1} parent=1 // pred_fallthru
      _
    // Predicated region
    $region30: #{tpu_custom_call.1} parent=1 // pred_check
      _
    $region31: #{tpu_custom_call.1} parent=1 // pred_check_branch
      %127 = sbr.rel (0) target = $region33
    $region32: #{tpu_custom_call.1} parent=1 // pred_region
      %129 = dma.done [#allocation4], 64
    $region33: #{tpu_custom_call.1} parent=1 // pred_fallthru
      _
    %130 = vsyncpa [#allocation3], 1
    %131 = vsyncpa [#allocation6], 1
    %132 = vsyncpa [#allocation4], 1

</llo_original>
